<compile_context>
chip_gen: v6e
topology: v6e:2x2x1
jax: 0.10.0
libtpu: 0.0.40
codegen_flags: <defaults>
</compile_context>

<pallas_src>
import jax
import jax.numpy as jnp
from jax.experimental import pallas as pl
from jax.experimental.pallas import tpu as pltpu


def _round_up(x, m):
    return ((x + m - 1) // m) * m


def _vmem_capacity_bytes():
    try:
        return int(pltpu.get_tpu_info().vmem_capacity_bytes)
    except Exception:
        return 64 * 1024 * 1024  # conservative (v7x-sized) fallback


def _agg_footprint_bytes(tm, tk, f_p):
    """Rough VMEM footprint of the aggregation kernel (double-buffered streams)."""
    a = 2 * tm * tk * 1          # int8 A tiles
    p = 2 * tk * f_p * 2         # bf16 P tiles
    r = 2 * tm * f_p * 4         # f32  R tiles
    dinv = 2 * tm * 128 * 4      # (tm,1) f32, lane-padded
    acc = tm * f_p * 4           # f32 accumulator scratch
    out = 2 * tm * f_p * 2       # bf16 output tiles
    return a + p + r + dinv + acc + out


def _choose_tiles(n, f_max_p):
    """Pick (tm, tk, n_pad, vmem_limit) per TPU generation.

    tm: output-row tile, tk: reduction tile (multiple of tm, divides n_pad).
    Large tiles amortize the ~0.35us per-grid-step overhead and cut redundant
    P re-streaming; tk is capped per generation (128 MiB vs 64 MiB VMEM).
    """
    n128 = _round_up(max(n, 1), 128)
    vmem_phys = _vmem_capacity_bytes()
    big_vmem = vmem_phys >= 96 * 1024 * 1024          # v5e / v6e (128 MiB)
    tk_target = 8192 if big_vmem else 4096            # v7x: 64 MiB physical
    vmem_limit = (100 if big_vmem else 46) * 1024 * 1024

    if n128 <= 1024:
        # Small-N fast path: whole layer in a single grid step.
        return n128, n128, n128, vmem_limit

    tm = 1024
    n_pad = _round_up(n128, tm)
    mult = n_pad // tm
    tk = tm
    budget = int(vmem_limit * 0.9)
    for d in range(mult, 0, -1):
        cand = d * tm
        if cand <= tk_target and mult % d == 0 and \
                _agg_footprint_bytes(tm, cand, f_max_p) <= budget:
            tk = cand
            break
    # TODO(synk): for very wide hidden dims the feature axis should be tiled too.
    return tm, tk, n_pad, vmem_limit


# ----------------------------------------------------------------------------
# Kernel 1: fused projection  P = x @ W_l ,  R = x @ W_r + b
# ----------------------------------------------------------------------------
def _proj_kernel(x_ref, wl_ref, wr_ref, b_ref, p_ref, r_ref):
    x = x_ref[...]                                                # (tm, Fi) bf16
    p = jnp.dot(x, wl_ref[...], preferred_element_type=jnp.float32)
    p_ref[...] = p.astype(p_ref.dtype)                            # bf16 (feeds MXU)
    r_ref[...] = jnp.dot(x, wr_ref[...],
                         preferred_element_type=jnp.float32) + b_ref[...]  # f32


def project(x_pad, w_l, w_r, b, *, tm, vmem_limit):
    n_pad, f_in_p = x_pad.shape
    f_out_p = w_l.shape[1]
    grid = (n_pad // tm,)
    return pl.pallas_call(
        _proj_kernel,
        out_shape=(jax.ShapeDtypeStruct((n_pad, f_out_p), jnp.bfloat16),
                   jax.ShapeDtypeStruct((n_pad, f_out_p), jnp.float32)),
        grid_spec=pltpu.PrefetchScalarGridSpec(
            num_scalar_prefetch=0,
            grid=grid,
            in_specs=[
                pl.BlockSpec((tm, f_in_p), lambda i: (i, 0)),        # x rows
                pl.BlockSpec((f_in_p, f_out_p), lambda i: (0, 0)),   # W_l resident
                pl.BlockSpec((f_in_p, f_out_p), lambda i: (0, 0)),   # W_r resident
                pl.BlockSpec((1, f_out_p), lambda i: (0, 0)),        # bias resident
            ],
            out_specs=[
                pl.BlockSpec((tm, f_out_p), lambda i: (i, 0)),       # P
                pl.BlockSpec((tm, f_out_p), lambda i: (i, 0)),       # R
            ],
        ),
        compiler_params=pltpu.CompilerParams(
            dimension_semantics=("parallel",),
            vmem_limit_bytes=vmem_limit),
    )(x_pad, w_l, w_r, b)


# ----------------------------------------------------------------------------
# Kernel 2: tiled mean aggregation + fused residual/bias/ReLU finalize
#   acc += A_count[i,k] @ P[k]     (int8 counts -> bf16 on the fly, f32 acc)
#   out  = relu(deg_inv * acc + R) (on the last reduction tile)
# ----------------------------------------------------------------------------
def _aggregate_kernel(a_ref, p_ref, r_ref, dinv_ref, o_ref, acc_ref):
    k = pl.program_id(1)

    @pl.when(k == 0)
    def _():
        acc_ref[...] = jnp.zeros_like(acc_ref)

    # int8 edge counts -> bf16 (exact for counts <= 127); MXU bf16 path, f32 acc.
    a = a_ref[...].astype(jnp.bfloat16)
    acc_ref[...] += jnp.dot(a, p_ref[...], preferred_element_type=jnp.float32)

    @pl.when(k == pl.num_programs(1) - 1)
    def _():
        out = dinv_ref[...] * acc_ref[...] + r_ref[...]   # exact f32 mean + self path
        o_ref[...] = jnp.maximum(out, 0.0).astype(o_ref.dtype)


def aggregate(a_pad, p, r, dinv, *, tm, tk, vmem_limit):
    n_pad = a_pad.shape[0]
    f_out_p = p.shape[1]
    grid = (n_pad // tm, n_pad // tk)
    return pl.pallas_call(
        _aggregate_kernel,
        out_shape=jax.ShapeDtypeStruct((n_pad, f_out_p), jnp.bfloat16),
        grid_spec=pltpu.PrefetchScalarGridSpec(
            num_scalar_prefetch=0,
            grid=grid,
            in_specs=[
                # Dominant stream; add pipeline_mode=pl.Buffered(3) here if the
                # A DMA is still exposed in a profile.
                pl.BlockSpec((tm, tk), lambda i, k: (i, k)),          # A (int8)
                pl.BlockSpec((tk, f_out_p), lambda i, k: (k, 0)),     # P (bf16)
                pl.BlockSpec((tm, f_out_p), lambda i, k: (i, 0)),     # R (f32)
                pl.BlockSpec((tm, 1), lambda i, k: (i, 0)),           # deg_inv (f32)
            ],
            out_specs=pl.BlockSpec((tm, f_out_p), lambda i, k: (i, 0)),
            scratch_shapes=[pltpu.VMEM((tm, f_out_p), jnp.float32)],
        ),
        compiler_params=pltpu.CompilerParams(
            dimension_semantics=("parallel", "arbitrary"),
            vmem_limit_bytes=vmem_limit),
    )(a_pad, p, r, dinv)


# ----------------------------------------------------------------------------
# Graph / parameter helpers (plain-JAX glue)
# ----------------------------------------------------------------------------
def build_adjacency(edge_index, num_nodes):
    """Integer in-edge counts A[i, j] = #edges j->i and exact f32 1/deg_in."""
    src = edge_index[0]
    dst = edge_index[1]
    counts = jnp.zeros((num_nodes, num_nodes), jnp.int32).at[dst, src].add(1)
    deg = jnp.sum(counts, axis=1, keepdims=True).astype(jnp.float32)
    dinv = jnp.where(deg > 0, 1.0 / jnp.maximum(deg, 1.0), 0.0)
    return counts, dinv


def init_sage_params(key, in_channels, hidden_channels, num_layers=2):
    """Synthetic init matching SAGEConv parameter shapes (weights as [F_in, F_out])."""
    feature_sizes = [in_channels] + [hidden_channels] * num_layers
    params = []
    for idx in range(num_layers):
        f_in, f_out = feature_sizes[idx], feature_sizes[idx + 1]
        key, k1, k2, k3 = jax.random.split(key, 4)
        scale = 1.0 / jnp.sqrt(jnp.float32(f_in))
        w_l = jax.random.uniform(k1, (f_in, f_out), jnp.float32, -scale, scale)
        w_r = jax.random.uniform(k2, (f_in, f_out), jnp.float32, -scale, scale)
        b = jax.random.uniform(k3, (1, f_out), jnp.float32, -scale, scale)
        params.append((w_l, w_r, b))
    return params


def sage_forward(params, x, edge_index):
    """Full SAGE forward; per layer: projection kernel + tiled aggregation kernel."""
    n, f0 = x.shape
    f_max_p = max(_round_up(max(w.shape), 128) for (w, _, _) in params)
    tm, tk, n_pad, vmem_limit = _choose_tiles(n, f_max_p)

    counts, dinv = build_adjacency(edge_index, n)
    # int8 counts halve the dominant HBM stream on all generations (clipped at 127;
    # per-pair multi-edge counts above that are not expected for real graphs).
    a_pad = jnp.zeros((n_pad, n_pad), jnp.int8).at[:n, :n].set(
        jnp.clip(counts, 0, 127).astype(jnp.int8))
    dinv_pad = jnp.zeros((n_pad, 1), jnp.float32).at[:n].set(dinv)

    # TODO(synk): for sparse graphs, drive the reduction index_map from a compacted
    # nonzero-block list via PrefetchScalarGridSpec(num_scalar_prefetch>0) so empty
    # A tiles skip both DMA and MXU work.

    h = x
    h_pad = None
    valid_cols = f0
    for (w_l, w_r, b) in params:
        f_in, f_out = w_l.shape
        f_in_p = _round_up(f_in, 128)
        f_out_p = _round_up(f_out, 128)

        # (Re)pad node features only when the layout changes; otherwise the previous
        # layer's padded bf16 output is consumed directly.
        if h_pad is None or h_pad.shape != (n_pad, f_in_p):
            h_pad = jnp.zeros((n_pad, f_in_p), jnp.bfloat16).at[:n, :f_in].set(
                h[:n, :f_in].astype(jnp.bfloat16))

        wl_p = jnp.zeros((f_in_p, f_out_p), jnp.bfloat16).at[:f_in, :f_out].set(
            w_l.astype(jnp.bfloat16))
        wr_p = jnp.zeros((f_in_p, f_out_p), jnp.bfloat16).at[:f_in, :f_out].set(
            w_r.astype(jnp.bfloat16))
        b_p = jnp.zeros((1, f_out_p), jnp.float32).at[:, :f_out].set(
            b.reshape(1, f_out))

        p, r = project(h_pad, wl_p, wr_p, b_p, tm=tm, vmem_limit=vmem_limit)
        h_pad = aggregate(a_pad, p, r, dinv_pad, tm=tm, tk=tk,
                          vmem_limit=vmem_limit)
        h = h_pad
        valid_cols = f_out

    return h_pad[:n, :valid_cols].astype(jnp.float32)


def sage_forward_reference(params, x, edge_index):
    """Plain-JAX reference mimicking the kernels' bf16 quantization points."""
    def q(v):
        return v.astype(jnp.bfloat16).astype(jnp.float32)

    counts, dinv = build_adjacency(edge_index, x.shape[0])
    a = counts.astype(jnp.float32)
    h = q(x)
    for (w_l, w_r, b) in params:
        p = q(h @ q(w_l))                          # projection kernel stores P as bf16
        r = h @ q(w_r) + b.reshape(1, -1)          # R kept in f32
        h = q(jnp.maximum(dinv * (a @ p) + r, 0.0))  # layer output stored as bf16
    return h


if __name__ == "__main__":
    key = jax.random.PRNGKey(0)
    num_nodes = 16
    in_channels = 8
    hidden_channels = 32
    num_layers = 2
    num_edges = 48

    k_x, k_src, k_dst, k_p = jax.random.split(key, 4)
    x = jax.random.normal(k_x, (num_nodes, in_channels), jnp.float32)
    edge_index = jnp.stack([
        jax.random.randint(k_src, (num_edges,), 0, num_nodes),
        jax.random.randint(k_dst, (num_edges,), 0, num_nodes),
    ]).astype(jnp.int32)

    params = init_sage_params(k_p, in_channels, hidden_channels, num_layers)

    fwd = jax.jit(sage_forward)
    out = fwd(params, x, edge_index)
    out = jax.block_until_ready(out)

    ref = sage_forward_reference(params, x, edge_index)
    assert out.shape == (num_nodes, hidden_channels), out.shape
    max_err = float(jnp.max(jnp.abs(out - ref)))
    assert jnp.allclose(out, ref, atol=2e-2, rtol=2e-2), max_err

    print("KERNEL_OK")
</pallas_src>

<mosaic_0001>
module attributes {stable_mosaic.version = 11 : i64} {
  func.func private @main(%arg0: i32) attributes {dimension_semantics = [#tpu.dimension_semantics<core_parallel>], iteration_bounds = array<i64: 2>, tpu.core_type = #tpu.core_type<sc_scalar_subcore>, window_params = []} {
    return
  }
}

module attributes {stable_mosaic.version = 11 : i64} {
  func.func private @main(%arg0: i32) attributes {dimension_semantics = [#tpu.dimension_semantics<core_parallel>], iteration_bounds = array<i64: 2>, tpu.core_type = #tpu.core_type<sc_scalar_subcore>, window_params = []} {
    return
  }
}

module attributes {stable_mosaic.version = 11 : i64} {
  func.func @_proj_kernel(%arg0: i32, %arg1: memref<128x128xbf16, #tpu.memory_space<vmem>>, %arg2: memref<128x128xbf16, #tpu.memory_space<vmem>>, %arg3: memref<128x128xbf16, #tpu.memory_space<vmem>>, %arg4: memref<1x128xf32, #tpu.memory_space<vmem>>, %arg5: memref<128x128xbf16, #tpu.memory_space<vmem>>, %arg6: memref<128x128xf32, #tpu.memory_space<vmem>>) attributes {dimension_semantics = [#tpu.dimension_semantics<parallel>], iteration_bounds = array<i64: 1>, scalar_prefetch = 0 : i64, scratch_operands = 0 : i64, tpu.core_type = #tpu.core_type<tc>, window_params = [{transform_indices = @transform_0, window_bounds = array<i64: 128, 128>}, {pipeline_mode = #tpu.pipeline_mode<synchronous>, transform_indices = @transform_1, window_bounds = array<i64: 128, 128>}, {pipeline_mode = #tpu.pipeline_mode<synchronous>, transform_indices = @transform_2, window_bounds = array<i64: 128, 128>}, {pipeline_mode = #tpu.pipeline_mode<synchronous>, transform_indices = @transform_3, window_bounds = array<i64: 1, 128>}, {transform_indices = @transform_4, window_bounds = array<i64: 128, 128>}, {transform_indices = @transform_5, window_bounds = array<i64: 128, 128>}]} {
    %c0 = arith.constant 0 : index
    %c0_0 = arith.constant 0 : index
    %0 = vector.load %arg1[%c0, %c0_0] : memref<128x128xbf16, #tpu.memory_space<vmem>>, vector<128x128xbf16>
    %c0_1 = arith.constant 0 : index
    %c0_2 = arith.constant 0 : index
    %1 = vector.load %arg2[%c0_1, %c0_2] : memref<128x128xbf16, #tpu.memory_space<vmem>>, vector<128x128xbf16>
    %cst = arith.constant dense<0.000000e+00> : vector<128x128xf32>
    %2 = tpu.matmul %0, %1, %cst {dimension_numbers = #tpu.dot_dimension_numbers<[1], [0], [0], [1], [0, 0, 1, 1], [], []>} : vector<128x128xbf16>, vector<128x128xbf16>, vector<128x128xf32> -> vector<128x128xf32>
    %3 = arith.truncf %2 : vector<128x128xf32> to vector<128x128xbf16>
    %c0_3 = arith.constant 0 : index
    %c0_4 = arith.constant 0 : index
    %4 = vector.load %arg5[%c0_3, %c0_4] : memref<128x128xbf16, #tpu.memory_space<vmem>>, vector<128x128xbf16>
    tpu.vector_store %arg5[%c0_3, %c0_4], %3 {strides = array<i32>} : memref<128x128xbf16, #tpu.memory_space<vmem>>, vector<128x128xbf16>,
    %c0_5 = arith.constant 0 : index
    %c0_6 = arith.constant 0 : index
    %5 = vector.load %arg3[%c0_5, %c0_6] : memref<128x128xbf16, #tpu.memory_space<vmem>>, vector<128x128xbf16>
    %cst_7 = arith.constant dense<0.000000e+00> : vector<128x128xf32>
    %6 = tpu.matmul %0, %5, %cst_7 {dimension_numbers = #tpu.dot_dimension_numbers<[1], [0], [0], [1], [0, 0, 1, 1], [], []>} : vector<128x128xbf16>, vector<128x128xbf16>, vector<128x128xf32> -> vector<128x128xf32>
    %c0_8 = arith.constant 0 : index
    %c0_9 = arith.constant 0 : index
    %7 = vector.load %arg4[%c0_8, %c0_9] : memref<1x128xf32, #tpu.memory_space<vmem>>, vector<1x128xf32>
    %8 = vector.broadcast %7 : vector<1x128xf32> to vector<128x128xf32>
    %9 = arith.addf %6, %8 : vector<128x128xf32>
    %c0_10 = arith.constant 0 : index
    %c0_11 = arith.constant 0 : index
    %10 = vector.load %arg6[%c0_10, %c0_11] : memref<128x128xf32, #tpu.memory_space<vmem>>, vector<128x128xf32>
    tpu.vector_store %arg6[%c0_10, %c0_11], %9 {strides = array<i32>} : memref<128x128xf32, #tpu.memory_space<vmem>>, vector<128x128xf32>,
    return
  }
  func.func @transform_0(%arg0: i32) -> (i32, i32) {
    %c0_i32 = arith.constant 0 : i32
    %c0_i32_0 = arith.constant 0 : i32
    return %arg0, %c0_i32 : i32, i32
  }
  func.func @transform_1(%arg0: i32) -> (i32, i32) {
    %c0_i32 = arith.constant 0 : i32
    %c0_i32_0 = arith.constant 0 : i32
    %c0_i32_1 = arith.constant 0 : i32
    return %c0_i32, %c0_i32_0 : i32, i32
  }
  func.func @transform_2(%arg0: i32) -> (i32, i32) {
    %c0_i32 = arith.constant 0 : i32
    %c0_i32_0 = arith.constant 0 : i32
    %c0_i32_1 = arith.constant 0 : i32
    return %c0_i32, %c0_i32_0 : i32, i32
  }
  func.func @transform_3(%arg0: i32) -> (i32, i32) {
    %c0_i32 = arith.constant 0 : i32
    %c0_i32_0 = arith.constant 0 : i32
    %c0_i32_1 = arith.constant 0 : i32
    return %c0_i32, %c0_i32_0 : i32, i32
  }
  func.func @transform_4(%arg0: i32) -> (i32, i32) {
    %c0_i32 = arith.constant 0 : i32
    %c0_i32_0 = arith.constant 0 : i32
    return %arg0, %c0_i32 : i32, i32
  }
  func.func @transform_5(%arg0: i32) -> (i32, i32) {
    %c0_i32 = arith.constant 0 : i32
    %c0_i32_0 = arith.constant 0 : i32
    return %arg0, %c0_i32 : i32, i32
  }
}

module attributes {stable_mosaic.version = 11 : i64} {
  func.func @_aggregate_kernel(%arg0: i32, %arg1: i32, %arg2: memref<128x128xi8, #tpu.memory_space<vmem>>, %arg3: memref<128x128xbf16, #tpu.memory_space<vmem>>, %arg4: memref<128x128xf32, #tpu.memory_space<vmem>>, %arg5: memref<128x1xf32, #tpu.memory_space<vmem>>, %arg6: memref<128x128xbf16, #tpu.memory_space<vmem>>, %arg7: memref<128x128xf32, #tpu.memory_space<vmem>>) attributes {dimension_semantics = [#tpu.dimension_semantics<parallel>, #tpu.dimension_semantics<arbitrary>], iteration_bounds = array<i64: 1, 1>, scalar_prefetch = 0 : i64, scratch_operands = 1 : i64, tpu.core_type = #tpu.core_type<tc>, window_params = [{transform_indices = @transform_0, window_bounds = array<i64: 128, 128>}, {transform_indices = @transform_1, window_bounds = array<i64: 128, 128>}, {transform_indices = @transform_2, window_bounds = array<i64: 128, 128>}, {transform_indices = @transform_3, window_bounds = array<i64: 128, 1>}, {transform_indices = @transform_4, window_bounds = array<i64: 128, 128>}]} {
    %c0_i32 = arith.constant 0 : i32
    %0 = arith.cmpi eq, %arg1, %c0_i32 : i32
    %1 = arith.extui %0 : i1 to i32
    %c0_i32_0 = arith.constant 0 : i32
    %2 = arith.cmpi ne, %1, %c0_i32_0 : i32
    scf.if %2 {
      %cst_10 = arith.constant 0.000000e+00 : f32
      %13 = vector.broadcast %cst_10 : f32 to vector<128x128xf32>
      %c0_11 = arith.constant 0 : index
      %c0_12 = arith.constant 0 : index
      %14 = vector.load %arg7[%c0_11, %c0_12] : memref<128x128xf32, #tpu.memory_space<vmem>>, vector<128x128xf32>
      tpu.vector_store %arg7[%c0_11, %c0_12], %13 {strides = array<i32>} : memref<128x128xf32, #tpu.memory_space<vmem>>, vector<128x128xf32>,
    } else {
    }
    %c0 = arith.constant 0 : index
    %c0_1 = arith.constant 0 : index
    %3 = vector.load %arg2[%c0, %c0_1] : memref<128x128xi8, #tpu.memory_space<vmem>>, vector<128x128xi8>
    %4 = arith.sitofp %3 : vector<128x128xi8> to vector<128x128xbf16>
    %c0_2 = arith.constant 0 : index
    %c0_3 = arith.constant 0 : index
    %5 = vector.load %arg7[%c0_2, %c0_3] : memref<128x128xf32, #tpu.memory_space<vmem>>, vector<128x128xf32>
    %c0_4 = arith.constant 0 : index
    %c0_5 = arith.constant 0 : index
    %6 = vector.load %arg3[%c0_4, %c0_5] : memref<128x128xbf16, #tpu.memory_space<vmem>>, vector<128x128xbf16>
    %cst = arith.constant dense<0.000000e+00> : vector<128x128xf32>
    %7 = tpu.matmul %4, %6, %cst {dimension_numbers = #tpu.dot_dimension_numbers<[1], [0], [0], [1], [0, 0, 1, 1], [], []>} : vector<128x128xbf16>, vector<128x128xbf16>, vector<128x128xf32> -> vector<128x128xf32>
    %8 = arith.addf %5, %7 : vector<128x128xf32>
    %c0_6 = arith.constant 0 : index
    %c0_7 = arith.constant 0 : index
    %9 = vector.load %arg7[%c0_6, %c0_7] : memref<128x128xf32, #tpu.memory_space<vmem>>, vector<128x128xf32>
    tpu.vector_store %arg7[%c0_6, %c0_7], %8 {strides = array<i32>} : memref<128x128xf32, #tpu.memory_space<vmem>>, vector<128x128xf32>,
    %c0_i32_8 = arith.constant 0 : i32
    %10 = arith.cmpi eq, %arg1, %c0_i32_8 : i32
    %11 = arith.extui %10 : i1 to i32
    %c0_i32_9 = arith.constant 0 : i32
    %12 = arith.cmpi ne, %11, %c0_i32_9 : i32
    scf.if %12 {
      %c0_10 = arith.constant 0 : index
      %c0_11 = arith.constant 0 : index
      %13 = vector.load %arg5[%c0_10, %c0_11] : memref<128x1xf32, #tpu.memory_space<vmem>>, vector<128x1xf32>
      %c0_12 = arith.constant 0 : index
      %c0_13 = arith.constant 0 : index
      %14 = vector.load %arg7[%c0_12, %c0_13] : memref<128x128xf32, #tpu.memory_space<vmem>>, vector<128x128xf32>
      %15 = vector.broadcast %13 : vector<128x1xf32> to vector<128x128xf32>
      %16 = arith.mulf %15, %14 : vector<128x128xf32>
      %c0_14 = arith.constant 0 : index
      %c0_15 = arith.constant 0 : index
      %17 = vector.load %arg4[%c0_14, %c0_15] : memref<128x128xf32, #tpu.memory_space<vmem>>, vector<128x128xf32>
      %18 = arith.addf %16, %17 : vector<128x128xf32>
      %cst_16 = arith.constant 0.000000e+00 : f32
      %19 = vector.broadcast %cst_16 : f32 to vector<128x128xf32>
      %20 = arith.maximumf %18, %19 : vector<128x128xf32>
      %21 = arith.truncf %20 : vector<128x128xf32> to vector<128x128xbf16>
      %c0_17 = arith.constant 0 : index
      %c0_18 = arith.constant 0 : index
      %22 = vector.load %arg6[%c0_17, %c0_18] : memref<128x128xbf16, #tpu.memory_space<vmem>>, vector<128x128xbf16>
      tpu.vector_store %arg6[%c0_17, %c0_18], %21 {strides = array<i32>} : memref<128x128xbf16, #tpu.memory_space<vmem>>, vector<128x128xbf16>,
    } else {
    }
    return
  }
  func.func @transform_0(%arg0: i32, %arg1: i32) -> (i32, i32) {
    %c0_i32 = arith.constant 0 : i32
    return %arg0, %arg1 : i32, i32
  }
  func.func @transform_1(%arg0: i32, %arg1: i32) -> (i32, i32) {
    %c0_i32 = arith.constant 0 : i32
    %c0_i32_0 = arith.constant 0 : i32
    return %arg1, %c0_i32 : i32, i32
  }
  func.func @transform_2(%arg0: i32, %arg1: i32) -> (i32, i32) {
    %c0_i32 = arith.constant 0 : i32
    %c0_i32_0 = arith.constant 0 : i32
    return %arg0, %c0_i32 : i32, i32
  }
  func.func @transform_3(%arg0: i32, %arg1: i32) -> (i32, i32) {
    %c0_i32 = arith.constant 0 : i32
    %c0_i32_0 = arith.constant 0 : i32
    return %arg0, %c0_i32 : i32, i32
  }
  func.func @transform_4(%arg0: i32, %arg1: i32) -> (i32, i32) {
    %c0_i32 = arith.constant 0 : i32
    %c0_i32_0 = arith.constant 0 : i32
    return %arg0, %c0_i32 : i32, i32
  }
}

</mosaic_0001>

<llo_original>
// kernel: sage_forward.5
$region0: #{sage_forward.5}
  #allocation0 [shape = 'u32[]', space=smem, size = 0x4, offset = 0x4, fixed_abs, tag = 'smem constant byte address 0x4 - core index']
  #allocation1 [shape = 'u32[144,128]{1,0:T(1,128)}', space=vmem, size = 0x12000, scoped, tag = 'internal scratch']
  #allocation2 [shape = 'f32[128,128]{1,0:T(8,128)}', space=vmem, size = 0x10000, scoped, tag = 'scratch operand']
  %s0 = inlined_call_operand.vmem [shape: s8[128,128], index: 0, kind: input, shape index: {}]
  %s1 = inlined_call_operand.vmem [shape: bf16[128,128], index: 1, kind: input, shape index: {}]
  %s2 = inlined_call_operand.vmem [shape: f32[128,128], index: 2, kind: input, shape index: {}]
  %s3 = inlined_call_operand.vmem [shape: f32[128,1], index: 3, kind: input, shape index: {}]
  %s4 = inlined_call_operand.vmem [shape: bf16[128,128], index: 4, kind: output, shape index: {}]
  %s5 = sld [smem:[#allocation0]]
  $region34: #{sage_forward.5} parent=0
    _
  %s7 = ssub.s32 1, %s5
  %s8 = scalar_select 0, %s7, %s5
  // Predicated region
  $region2: #{sage_forward.5} parent=0 // pred_check
    _
  $region3: #{sage_forward.5} parent=0 // pred_check_branch
    %10 = sbr.rel (0) target = $region5
  $region4: #{sage_forward.5} parent=0 // pred_region
    _
  $region5: #{sage_forward.5} parent=0 // pred_fallthru
    _
  // Predicated region
  $region6: #{sage_forward.5} parent=0 // pred_check
    _
  $region7: #{sage_forward.5} parent=0 // pred_check_branch
    %12 = sbr.rel (0) target = $region9
  $region8: #{sage_forward.5} parent=0 // pred_region
    _
  $region9: #{sage_forward.5} parent=0 // pred_fallthru
    _
  // Predicated region
  $region10: #{sage_forward.5} parent=0 // pred_check
    _
  $region11: #{sage_forward.5} parent=0 // pred_check_branch
    %14 = sbr.rel (0) target = $region13
  $region12: #{sage_forward.5} parent=0 // pred_region
    _
  $region13: #{sage_forward.5} parent=0 // pred_fallthru
    _
  // Predicated region
  $region14: #{sage_forward.5} parent=0 // pred_check
    _
  $region15: #{sage_forward.5} parent=0 // pred_check_branch
    %16 = sbr.rel (0) target = $region17
  $region16: #{sage_forward.5} parent=0 // pred_region
    _
  $region17: #{sage_forward.5} parent=0 // pred_fallthru
    _
  %p18 = scmp.eq.s32.totalorder 0, 0
  // Predicated region
  $region18: #{sage_forward.5} parent=0 // pred_check
    %p19 = pneg %p18
  $region19: #{sage_forward.5} parent=0 // pred_check_branch
    %21 = sbr.rel (%p19) target = $region21
  $region20: #{sage_forward.5} parent=0 // pred_region
    %22 = vst [vmem:[#allocation2] sm:$0xff] 0.0
    %23 = vst [vmem:[#allocation2 + $0x8] sm:$0xff] 0.0
    %24 = vst [vmem:[#allocation2 + $0x10] sm:$0xff] 0.0
    %25 = vst [vmem:[#allocation2 + $0x18] sm:$0xff] 0.0
    %26 = vst [vmem:[#allocation2 + $0x20] sm:$0xff] 0.0
    %27 = vst [vmem:[#allocation2 + $0x28] sm:$0xff] 0.0
    %28 = vst [vmem:[#allocation2 + $0x30] sm:$0xff] 0.0
    %29 = vst [vmem:[#allocation2 + $0x38] sm:$0xff] 0.0
    %30 = vst [vmem:[#allocation2 + $0x40] sm:$0xff] 0.0
    %31 = vst [vmem:[#allocation2 + $0x48] sm:$0xff] 0.0
    %32 = vst [vmem:[#allocation2 + $0x50] sm:$0xff] 0.0
    %33 = vst [vmem:[#allocation2 + $0x58] sm:$0xff] 0.0
    %34 = vst [vmem:[#allocation2 + $0x60] sm:$0xff] 0.0
    %35 = vst [vmem:[#allocation2 + $0x68] sm:$0xff] 0.0
    %36 = vst [vmem:[#allocation2 + $0x70] sm:$0xff] 0.0
    %37 = vst [vmem:[#allocation2 + $0x78] sm:$0xff] 0.0
  $region21: #{sage_forward.5} parent=0 // pred_fallthru
    _
  %v38 = vld [vmem:[%s0] sm:$0xff]
  %v39 = vld [vmem:[%s0 + $0x8] sm:$0xff]
  %v40 = vld [vmem:[%s0 + $0x10] sm:$0xff]
  %v41 = vld [vmem:[%s0 + $0x18] sm:$0xff]
  %v42 = vunpack.c.l.s8.bf16 %v38
  %v43 = vunpack.c.h.s8.bf16 %v38
  %v44 = vunpack.c.l.s8.bf16 %v39
  %v45 = vunpack.c.h.s8.bf16 %v39
  %v46 = vunpack.c.l.s8.bf16 %v40
  %v47 = vunpack.c.h.s8.bf16 %v40
  %v48 = vunpack.c.l.s8.bf16 %v41
  %v49 = vunpack.c.h.s8.bf16 %v41
  %v50 = vld [vmem:[#allocation2] sm:$0xff]
  %v51 = vld [vmem:[#allocation2 + $0x8] sm:$0xff]
  %v52 = vld [vmem:[#allocation2 + $0x10] sm:$0xff]
  %v53 = vld [vmem:[#allocation2 + $0x18] sm:$0xff]
  %v54 = vld [vmem:[#allocation2 + $0x20] sm:$0xff]
  %v55 = vld [vmem:[#allocation2 + $0x28] sm:$0xff]
  %v56 = vld [vmem:[#allocation2 + $0x30] sm:$0xff]
  %v57 = vld [vmem:[#allocation2 + $0x38] sm:$0xff]
  %v58 = vld [vmem:[#allocation2 + $0x40] sm:$0xff]
  %v59 = vld [vmem:[#allocation2 + $0x48] sm:$0xff]
  %v60 = vld [vmem:[#allocation2 + $0x50] sm:$0xff]
  %v61 = vld [vmem:[#allocation2 + $0x58] sm:$0xff]
  %v62 = vld [vmem:[#allocation2 + $0x60] sm:$0xff]
  %v63 = vld [vmem:[#allocation2 + $0x68] sm:$0xff]
  %v64 = vld [vmem:[#allocation2 + $0x70] sm:$0xff]
  %v65 = vld [vmem:[#allocation2 + $0x78] sm:$0xff]
  %v66 = vld [vmem:[%s1] sm:$0xf]
  %v67 = vld [vmem:[%s1 + $0x4] sm:$0xf]
  %v68 = vld [vmem:[%s1 + $0x8] sm:$0xf]
  %v69 = vld [vmem:[%s1 + $0xc] sm:$0xf]
  %v70 = vld [vmem:[%s1 + $0x10] sm:$0xf]
  %v71 = vld [vmem:[%s1 + $0x14] sm:$0xf]
  %v72 = vld [vmem:[%s1 + $0x18] sm:$0xf]
  %v73 = vld [vmem:[%s1 + $0x1c] sm:$0xf]
  %v74 = vld [vmem:[%s1 + $0x20] sm:$0xf]
  %v75 = vld [vmem:[%s1 + $0x24] sm:$0xf]
  %v76 = vld [vmem:[%s1 + $0x28] sm:$0xf]
  %v77 = vld [vmem:[%s1 + $0x2c] sm:$0xf]
  %v78 = vld [vmem:[%s1 + $0x30] sm:$0xf]
  %v79 = vld [vmem:[%s1 + $0x34] sm:$0xf]
  %v80 = vld [vmem:[%s1 + $0x38] sm:$0xf]
  %v81 = vld [vmem:[%s1 + $0x3c] sm:$0xf]
  %v98 = vunpack.c.l.b16 %v66
  %v99 = vunpack.c.l.b16 %v67
  %v100 = vunpack.c.l.b16 %v68
  %v101 = vunpack.c.l.b16 %v69
  %v102 = vunpack.c.l.b16 %v70
  %v103 = vunpack.c.l.b16 %v71
  %v104 = vunpack.c.l.b16 %v72
  %v105 = vunpack.c.l.b16 %v73
  %v106 = vunpack.c.l.b16 %v74
  %v107 = vunpack.c.l.b16 %v75
  %v108 = vunpack.c.l.b16 %v76
  %v109 = vunpack.c.l.b16 %v77
  %v110 = vunpack.c.l.b16 %v78
  %v111 = vunpack.c.l.b16 %v79
  %v112 = vunpack.c.l.b16 %v80
  %v113 = vunpack.c.l.b16 %v81
  %v114 = vpack.c.b16 %v99, %v98
  %v115 = vpack.c.b16 %v101, %v100
  %v116 = vpack.c.b16 %v103, %v102
  %v117 = vpack.c.b16 %v105, %v104
  %v118 = vpack.c.b16 %v107, %v106
  %v119 = vpack.c.b16 %v109, %v108
  %v120 = vpack.c.b16 %v111, %v110
  %v121 = vpack.c.b16 %v113, %v112
  %130 = vmatprep.subr.bf16.mxu0 0
  %131 = vmatpush1.bf16.msra.mxu0 %v121
  %132 = vmatprep.subr.bf16.mxu0 0
  %133 = vmatpush1.bf16.msra.mxu0 %v120
  %134 = vmatprep.subr.bf16.mxu0 0
  %135 = vmatpush1.bf16.msra.mxu0 %v119
  %136 = vmatprep.subr.bf16.mxu0 0
  %137 = vmatpush1.bf16.msra.mxu0 %v118
  %138 = vmatprep.subr.bf16.mxu0 0
  %139 = vmatpush1.bf16.msra.mxu0 %v117
  %140 = vmatprep.subr.bf16.mxu0 0
  %141 = vmatpush1.bf16.msra.mxu0 %v116
  %142 = vmatprep.subr.bf16.mxu0 0
  %143 = vmatpush1.bf16.msra.mxu0 %v115
  %144 = vmatprep.subr.bf16.mxu0 0
  %145 = vmatpush1.bf16.msra.mxu0 %v114
  %146 = vmatprep.subr.bf16.mxu0 0
  %147 = vmatpush2.bf16.msra.mxu0 0
  %148 = vmatprep.subr.bf16.mxu0 0
  %149 = vmatpush2.bf16.msra.mxu0 0
  %150 = vmatprep.subr.bf16.mxu0 0
  %151 = vmatpush2.bf16.msra.mxu0 0
  %152 = vmatprep.subr.bf16.mxu0 0
  %153 = vmatpush2.bf16.msra.mxu0 0
  %154 = vmatprep.subr.bf16.mxu0 0
  %155 = vmatpush2.bf16.msra.mxu0 0
  %156 = vmatprep.subr.bf16.mxu0 0
  %157 = vmatpush2.bf16.msra.mxu0 0
  %158 = vmatprep.subr.bf16.mxu0 0
  %159 = vmatpush2.bf16.msra.mxu0 0
  %160 = vmatprep.subr.bf16.mxu0 0
  %161 = vmatpush2.bf16.msra.mxu0 0
  %162 = vmatprep.mubr.bf16.mxu0 0
  %163 = vmatmul.mubr.bf16.gmra.mxu0 %v42
  %v164 = vpop.f32.mrf.mxu0
  %v165 = vadd.f32 0.0, %v164
  %v166 = vpop.f32.mrf.mxu0
  %v167 = vpop.f32.mrf.mxu0
  %v168 = vadd.f32 0.0, %v167
  %v169 = vpop.f32.mrf.mxu0
  %170 = vmatprep.mubr.bf16.mxu0 0
  %171 = vmatmul.mubr.bf16.gmra.mxu0 %v43
  %v172 = vpop.f32.mrf.mxu0
  %v173 = vadd.f32 0.0, %v172
  %v174 = vpop.f32.mrf.mxu0
  %v175 = vpop.f32.mrf.mxu0
  %v176 = vadd.f32 0.0, %v175
  %v177 = vpop.f32.mrf.mxu0
  %178 = vmatprep.mubr.bf16.mxu0 0
  %179 = vmatmul.mubr.bf16.gmra.mxu0 %v44
  %v180 = vpop.f32.mrf.mxu0
  %v181 = vadd.f32 0.0, %v180
  %v182 = vpop.f32.mrf.mxu0
  %v183 = vpop.f32.mrf.mxu0
  %v184 = vadd.f32 0.0, %v183
  %v185 = vpop.f32.mrf.mxu0
  %186 = vmatprep.mubr.bf16.mxu0 0
  %187 = vmatmul.mubr.bf16.gmra.mxu0 %v45
  %v188 = vpop.f32.mrf.mxu0
  %v189 = vadd.f32 0.0, %v188
  %v190 = vpop.f32.mrf.mxu0
  %v191 = vpop.f32.mrf.mxu0
  %v192 = vadd.f32 0.0, %v191
  %v193 = vpop.f32.mrf.mxu0
  %194 = vmatprep.mubr.bf16.mxu0 0
  %195 = vmatmul.mubr.bf16.gmra.mxu0 %v46
  %v196 = vpop.f32.mrf.mxu0
  %v197 = vadd.f32 0.0, %v196
  %v198 = vpop.f32.mrf.mxu0
  %v199 = vpop.f32.mrf.mxu0
  %v200 = vadd.f32 0.0, %v199
  %v201 = vpop.f32.mrf.mxu0
  %202 = vmatprep.mubr.bf16.mxu0 0
  %203 = vmatmul.mubr.bf16.gmra.mxu0 %v47
  %v204 = vpop.f32.mrf.mxu0
  %v205 = vadd.f32 0.0, %v204
  %v206 = vpop.f32.mrf.mxu0
  %v207 = vpop.f32.mrf.mxu0
  %v208 = vadd.f32 0.0, %v207
  %v209 = vpop.f32.mrf.mxu0
  %210 = vmatprep.mubr.bf16.mxu0 0
  %211 = vmatmul.mubr.bf16.gmra.mxu0 %v48
  %v212 = vpop.f32.mrf.mxu0
  %v213 = vadd.f32 0.0, %v212
  %v214 = vpop.f32.mrf.mxu0
  %v215 = vpop.f32.mrf.mxu0
  %v216 = vadd.f32 0.0, %v215
  %v217 = vpop.f32.mrf.mxu0
  %218 = vmatprep.mubr.bf16.mxu0 0
  %219 = vmatmul.mubr.bf16.gmra.mxu0 %v49
  %v220 = vpop.f32.mrf.mxu0
  %v221 = vadd.f32 0.0, %v220
  %v222 = vpop.f32.mrf.mxu0
  %v223 = vpop.f32.mrf.mxu0
  %v224 = vadd.f32 0.0, %v223
  %v225 = vpop.f32.mrf.mxu0
  %226 = vdwg.mxu0
  %v227 = vadd.f32 %v50, %v165
  %v228 = vadd.f32 %v51, %v168
  %v229 = vadd.f32 %v52, %v173
  %v230 = vadd.f32 %v53, %v176
  %v231 = vadd.f32 %v54, %v181
  %v232 = vadd.f32 %v55, %v184
  %v233 = vadd.f32 %v56, %v189
  %v234 = vadd.f32 %v57, %v192
  %v235 = vadd.f32 %v58, %v197
  %v236 = vadd.f32 %v59, %v200
  %v237 = vadd.f32 %v60, %v205
  %v238 = vadd.f32 %v61, %v208
  %v239 = vadd.f32 %v62, %v213
  %v240 = vadd.f32 %v63, %v216
  %v241 = vadd.f32 %v64, %v221
  %v242 = vadd.f32 %v65, %v224
  %243 = vst [vmem:[#allocation2] sm:$0xff] %v227
  %244 = vst [vmem:[#allocation2 + $0x8] sm:$0xff] %v228
  %245 = vst [vmem:[#allocation2 + $0x10] sm:$0xff] %v229
  %246 = vst [vmem:[#allocation2 + $0x18] sm:$0xff] %v230
  %247 = vst [vmem:[#allocation2 + $0x20] sm:$0xff] %v231
  %248 = vst [vmem:[#allocation2 + $0x28] sm:$0xff] %v232
  %249 = vst [vmem:[#allocation2 + $0x30] sm:$0xff] %v233
  %250 = vst [vmem:[#allocation2 + $0x38] sm:$0xff] %v234
  %251 = vst [vmem:[#allocation2 + $0x40] sm:$0xff] %v235
  %252 = vst [vmem:[#allocation2 + $0x48] sm:$0xff] %v236
  %253 = vst [vmem:[#allocation2 + $0x50] sm:$0xff] %v237
  %254 = vst [vmem:[#allocation2 + $0x58] sm:$0xff] %v238
  %255 = vst [vmem:[#allocation2 + $0x60] sm:$0xff] %v239
  %256 = vst [vmem:[#allocation2 + $0x68] sm:$0xff] %v240
  %257 = vst [vmem:[#allocation2 + $0x70] sm:$0xff] %v241
  %258 = vst [vmem:[#allocation2 + $0x78] sm:$0xff] %v242
  // Predicated region
  $region22: #{sage_forward.5} parent=0 // pred_check
    %p259 = pneg %p18
  $region23: #{sage_forward.5} parent=0 // pred_check_branch
    %261 = sbr.rel (%p259) target = $region25
  $region24: #{sage_forward.5} parent=0 // pred_region
    %v262 = vld [vmem:[%s3] sm:$0xff]
    %v263 = vld [vmem:[%s3 + $0x8] sm:$0xff]
    %v264 = vld [vmem:[%s3 + $0x10] sm:$0xff]
    %v265 = vld [vmem:[%s3 + $0x18] sm:$0xff]
    %v266 = vld [vmem:[%s3 + $0x20] sm:$0xff]
    %v267 = vld [vmem:[%s3 + $0x28] sm:$0xff]
    %v268 = vld [vmem:[%s3 + $0x30] sm:$0xff]
    %v269 = vld [vmem:[%s3 + $0x38] sm:$0xff]
    %v270 = vld [vmem:[%s3 + $0x40] sm:$0xff]
    %v271 = vld [vmem:[%s3 + $0x48] sm:$0xff]
    %v272 = vld [vmem:[%s3 + $0x50] sm:$0xff]
    %v273 = vld [vmem:[%s3 + $0x58] sm:$0xff]
    %v274 = vld [vmem:[%s3 + $0x60] sm:$0xff]
    %v275 = vld [vmem:[%s3 + $0x68] sm:$0xff]
    %v276 = vld [vmem:[%s3 + $0x70] sm:$0xff]
    %v277 = vld [vmem:[%s3 + $0x78] sm:$0xff]
    %v278 = vld [vmem:[#allocation2] sm:$0xff]
    %v279 = vld [vmem:[#allocation2 + $0x8] sm:$0xff]
    %v280 = vld [vmem:[#allocation2 + $0x10] sm:$0xff]
    %v281 = vld [vmem:[#allocation2 + $0x18] sm:$0xff]
    %v282 = vld [vmem:[#allocation2 + $0x20] sm:$0xff]
    %v283 = vld [vmem:[#allocation2 + $0x28] sm:$0xff]
    %v284 = vld [vmem:[#allocation2 + $0x30] sm:$0xff]
    %v285 = vld [vmem:[#allocation2 + $0x38] sm:$0xff]
    %v286 = vld [vmem:[#allocation2 + $0x40] sm:$0xff]
    %v287 = vld [vmem:[#allocation2 + $0x48] sm:$0xff]
    %v288 = vld [vmem:[#allocation2 + $0x50] sm:$0xff]
    %v289 = vld [vmem:[#allocation2 + $0x58] sm:$0xff]
    %v290 = vld [vmem:[#allocation2 + $0x60] sm:$0xff]
    %v291 = vld [vmem:[#allocation2 + $0x68] sm:$0xff]
    %v292 = vld [vmem:[#allocation2 + $0x70] sm:$0xff]
    %v293 = vld [vmem:[#allocation2 + $0x78] sm:$0xff]
    %295 = vset.pattern.permute.xlu0 0
    %296 = vperm.xlu0 %295, %v262
    %v297 = vpop.permute.xlu0 %296
    %300 = vset.pattern.permute.xlu0 0
    %301 = vperm.xlu0 %300, %v263
    %v302 = vpop.permute.xlu0 %301
    %305 = vset.pattern.permute.xlu0 0
    %306 = vperm.xlu0 %305, %v264
    %v307 = vpop.permute.xlu0 %306
    %310 = vset.pattern.permute.xlu0 0
    %311 = vperm.xlu0 %310, %v265
    %v312 = vpop.permute.xlu0 %311
    %315 = vset.pattern.permute.xlu0 0
    %316 = vperm.xlu0 %315, %v266
    %v317 = vpop.permute.xlu0 %316
    %320 = vset.pattern.permute.xlu0 0
    %321 = vperm.xlu0 %320, %v267
    %v322 = vpop.permute.xlu0 %321
    %325 = vset.pattern.permute.xlu0 0
    %326 = vperm.xlu0 %325, %v268
    %v327 = vpop.permute.xlu0 %326
    %330 = vset.pattern.permute.xlu0 0
    %331 = vperm.xlu0 %330, %v269
    %v332 = vpop.permute.xlu0 %331
    %335 = vset.pattern.permute.xlu0 0
    %336 = vperm.xlu0 %335, %v270
    %v337 = vpop.permute.xlu0 %336
    %340 = vset.pattern.permute.xlu0 0
    %341 = vperm.xlu0 %340, %v271
    %v342 = vpop.permute.xlu0 %341
    %345 = vset.pattern.permute.xlu0 0
    %346 = vperm.xlu0 %345, %v272
    %v347 = vpop.permute.xlu0 %346
    %350 = vset.pattern.permute.xlu0 0
    %351 = vperm.xlu0 %350, %v273
    %v352 = vpop.permute.xlu0 %351
    %355 = vset.pattern.permute.xlu0 0
    %356 = vperm.xlu0 %355, %v274
    %v357 = vpop.permute.xlu0 %356
    %360 = vset.pattern.permute.xlu0 0
    %361 = vperm.xlu0 %360, %v275
    %v362 = vpop.permute.xlu0 %361
    %365 = vset.pattern.permute.xlu0 0
    %366 = vperm.xlu0 %365, %v276
    %v367 = vpop.permute.xlu0 %366
    %370 = vset.pattern.permute.xlu0 0
    %371 = vperm.xlu0 %370, %v277
    %v372 = vpop.permute.xlu0 %371
    %v374 = vmul.f32 %v297, %v278
    %v375 = vmul.f32 %v302, %v279
    %v376 = vmul.f32 %v307, %v280
    %v377 = vmul.f32 %v312, %v281
    %v378 = vmul.f32 %v317, %v282
    %v379 = vmul.f32 %v322, %v283
    %v380 = vmul.f32 %v327, %v284
    %v381 = vmul.f32 %v332, %v285
    %v382 = vmul.f32 %v337, %v286
    %v383 = vmul.f32 %v342, %v287
    %v384 = vmul.f32 %v347, %v288
    %v385 = vmul.f32 %v352, %v289
    %v386 = vmul.f32 %v357, %v290
    %v387 = vmul.f32 %v362, %v291
    %v388 = vmul.f32 %v367, %v292
    %v389 = vmul.f32 %v372, %v293
    %v390 = vld [vmem:[%s2] sm:$0xff]
    %v391 = vld [vmem:[%s2 + $0x8] sm:$0xff]
    %v392 = vld [vmem:[%s2 + $0x10] sm:$0xff]
    %v393 = vld [vmem:[%s2 + $0x18] sm:$0xff]
    %v394 = vld [vmem:[%s2 + $0x20] sm:$0xff]
    %v395 = vld [vmem:[%s2 + $0x28] sm:$0xff]
    %v396 = vld [vmem:[%s2 + $0x30] sm:$0xff]
    %v397 = vld [vmem:[%s2 + $0x38] sm:$0xff]
    %v398 = vld [vmem:[%s2 + $0x40] sm:$0xff]
    %v399 = vld [vmem:[%s2 + $0x48] sm:$0xff]
    %v400 = vld [vmem:[%s2 + $0x50] sm:$0xff]
    %v401 = vld [vmem:[%s2 + $0x58] sm:$0xff]
    %v402 = vld [vmem:[%s2 + $0x60] sm:$0xff]
    %v403 = vld [vmem:[%s2 + $0x68] sm:$0xff]
    %v404 = vld [vmem:[%s2 + $0x70] sm:$0xff]
    %v405 = vld [vmem:[%s2 + $0x78] sm:$0xff]
    %v406 = vadd.f32 %v374, %v390
    %v407 = vadd.f32 %v375, %v391
    %v408 = vadd.f32 %v376, %v392
    %v409 = vadd.f32 %v377, %v393
    %v410 = vadd.f32 %v378, %v394
    %v411 = vadd.f32 %v379, %v395
    %v412 = vadd.f32 %v380, %v396
    %v413 = vadd.f32 %v381, %v397
    %v414 = vadd.f32 %v382, %v398
    %v415 = vadd.f32 %v383, %v399
    %v416 = vadd.f32 %v384, %v400
    %v417 = vadd.f32 %v385, %v401
    %v418 = vadd.f32 %v386, %v402
    %v419 = vadd.f32 %v387, %v403
    %v420 = vadd.f32 %v388, %v404
    %v421 = vadd.f32 %v389, %v405
    %v422 = vmax.f32 %v406, 0.0
    %v423 = vmax.f32 %v407, 0.0
    %v424 = vmax.f32 %v408, 0.0
    %v425 = vmax.f32 %v409, 0.0
    %v426 = vmax.f32 %v410, 0.0
    %v427 = vmax.f32 %v411, 0.0
    %v428 = vmax.f32 %v412, 0.0
    %v429 = vmax.f32 %v413, 0.0
    %v430 = vmax.f32 %v414, 0.0
    %v431 = vmax.f32 %v415, 0.0
    %v432 = vmax.f32 %v416, 0.0
    %v433 = vmax.f32 %v417, 0.0
    %v434 = vmax.f32 %v418, 0.0
    %v435 = vmax.f32 %v419, 0.0
    %v436 = vmax.f32 %v420, 0.0
    %v437 = vmax.f32 %v421, 0.0
    %v438 = vpack.c.bf16 %v423, %v422
    %v439 = vpack.c.bf16 %v425, %v424
    %v440 = vpack.c.bf16 %v427, %v426
    %v441 = vpack.c.bf16 %v429, %v428
    %v442 = vpack.c.bf16 %v431, %v430
    %v443 = vpack.c.bf16 %v433, %v432
    %v444 = vpack.c.bf16 %v435, %v434
    %v445 = vpack.c.bf16 %v437, %v436
    %v454 = vunpack.c.l.b16 %v438
    %v455 = vunpack.c.h.b16 %v438
    %v456 = vunpack.c.l.b16 %v439
    %v457 = vunpack.c.h.b16 %v439
    %v458 = vunpack.c.l.b16 %v440
    %v459 = vunpack.c.h.b16 %v440
    %v460 = vunpack.c.l.b16 %v441
    %v461 = vunpack.c.h.b16 %v441
    %v462 = vunpack.c.l.b16 %v442
    %v463 = vunpack.c.h.b16 %v442
    %v464 = vunpack.c.l.b16 %v443
    %v465 = vunpack.c.h.b16 %v443
    %v466 = vunpack.c.l.b16 %v444
    %v467 = vunpack.c.h.b16 %v444
    %v468 = vunpack.c.l.b16 %v445
    %v469 = vunpack.c.h.b16 %v445
    %v470 = vpack.c.b16 %v454, %v454
    %v471 = vpack.c.b16 %v455, %v455
    %v472 = vpack.c.b16 %v456, %v456
    %v473 = vpack.c.b16 %v457, %v457
    %v474 = vpack.c.b16 %v458, %v458
    %v475 = vpack.c.b16 %v459, %v459
    %v476 = vpack.c.b16 %v460, %v460
    %v477 = vpack.c.b16 %v461, %v461
    %v478 = vpack.c.b16 %v462, %v462
    %v479 = vpack.c.b16 %v463, %v463
    %v480 = vpack.c.b16 %v464, %v464
    %v481 = vpack.c.b16 %v465, %v465
    %v482 = vpack.c.b16 %v466, %v466
    %v483 = vpack.c.b16 %v467, %v467
    %v484 = vpack.c.b16 %v468, %v468
    %v485 = vpack.c.b16 %v469, %v469
    %502 = vst [vmem:[%s4] sm:$0xf] %v470
    %503 = vst [vmem:[%s4 + $0x4] sm:$0xf] %v471
    %504 = vst [vmem:[%s4 + $0x8] sm:$0xf] %v472
    %505 = vst [vmem:[%s4 + $0xc] sm:$0xf] %v473
    %506 = vst [vmem:[%s4 + $0x10] sm:$0xf] %v474
    %507 = vst [vmem:[%s4 + $0x14] sm:$0xf] %v475
    %508 = vst [vmem:[%s4 + $0x18] sm:$0xf] %v476
    %509 = vst [vmem:[%s4 + $0x1c] sm:$0xf] %v477
    %510 = vst [vmem:[%s4 + $0x20] sm:$0xf] %v478
    %511 = vst [vmem:[%s4 + $0x24] sm:$0xf] %v479
    %512 = vst [vmem:[%s4 + $0x28] sm:$0xf] %v480
    %513 = vst [vmem:[%s4 + $0x2c] sm:$0xf] %v481
    %514 = vst [vmem:[%s4 + $0x30] sm:$0xf] %v482
    %515 = vst [vmem:[%s4 + $0x34] sm:$0xf] %v483
    %516 = vst [vmem:[%s4 + $0x38] sm:$0xf] %v484
    %517 = vst [vmem:[%s4 + $0x3c] sm:$0xf] %v485
  $region25: #{sage_forward.5} parent=0 // pred_fallthru
    _
  // Predicated region
  $region26: #{sage_forward.5} parent=0 // pred_check
    _
  $region27: #{sage_forward.5} parent=0 // pred_check_branch
    %519 = sbr.rel (0) target = $region29
  $region28: #{sage_forward.5} parent=0 // pred_region
    _
  $region29: #{sage_forward.5} parent=0 // pred_fallthru
    _
  // Predicated region
  $region30: #{sage_forward.5} parent=0 // pred_check
    _
  $region31: #{sage_forward.5} parent=0 // pred_check_branch
    %521 = sbr.rel (0) target = $region33
  $region32: #{sage_forward.5} parent=0 // pred_region
    _
  $region33: #{sage_forward.5} parent=0 // pred_fallthru
    _

// kernel: sage_forward.4
$region0: #{sage_forward.4}
  #allocation0 [shape = 'u32[]', space=smem, size = 0x4, offset = 0x4, fixed_abs, tag = 'smem constant byte address 0x4 - core index']
  #allocation1 [shape = 'u32[144,128]{1,0:T(1,128)}', space=vmem, size = 0x12000, scoped, tag = 'internal scratch']
  %s0 = inlined_call_operand.vmem [shape: bf16[128,128], index: 0, kind: input, shape index: {}]
  %s1 = inlined_call_operand.vmem [shape: bf16[128,128], index: 1, kind: input, shape index: {}]
  %s2 = inlined_call_operand.vmem [shape: bf16[128,128], index: 2, kind: input, shape index: {}]
  %s3 = inlined_call_operand.vmem [shape: f32[1,128], index: 3, kind: input, shape index: {}]
  %s4 = inlined_call_operand.vmem [shape: bf16[128,128], index: 4, kind: output, shape index: {0}]
  %s5 = inlined_call_operand.vmem [shape: f32[128,128], index: 5, kind: output, shape index: {1}]
  %6 = xla_tuple %s4, %s5
  %s7 = sld [smem:[#allocation0]]
  $region34: #{sage_forward.4} parent=0
    _
  %s9 = ssub.s32 1, %s7
  %s10 = scalar_select 0, %s9, %s7
  // Predicated region
  $region2: #{sage_forward.4} parent=0 // pred_check
    _
  $region3: #{sage_forward.4} parent=0 // pred_check_branch
    %12 = sbr.rel (0) target = $region5
  $region4: #{sage_forward.4} parent=0 // pred_region
    _
  $region5: #{sage_forward.4} parent=0 // pred_fallthru
    _
  // Predicated region
  $region6: #{sage_forward.4} parent=0 // pred_check
    _
  $region7: #{sage_forward.4} parent=0 // pred_check_branch
    %14 = sbr.rel (0) target = $region9
  $region8: #{sage_forward.4} parent=0 // pred_region
    _
  $region9: #{sage_forward.4} parent=0 // pred_fallthru
    _
  // Predicated region
  $region10: #{sage_forward.4} parent=0 // pred_check
    _
  $region11: #{sage_forward.4} parent=0 // pred_check_branch
    %16 = sbr.rel (0) target = $region13
  $region12: #{sage_forward.4} parent=0 // pred_region
    _
  $region13: #{sage_forward.4} parent=0 // pred_fallthru
    _
  // Predicated region
  $region14: #{sage_forward.4} parent=0 // pred_check
    _
  $region15: #{sage_forward.4} parent=0 // pred_check_branch
    %18 = sbr.rel (0) target = $region17
  $region16: #{sage_forward.4} parent=0 // pred_region
    _
  $region17: #{sage_forward.4} parent=0 // pred_fallthru
    _
  %v20 = vld [vmem:[%s0] sm:$0xf]
  %v21 = vld [vmem:[%s0 + $0x4] sm:$0xf]
  %v22 = vld [vmem:[%s0 + $0x8] sm:$0xf]
  %v23 = vld [vmem:[%s0 + $0xc] sm:$0xf]
  %v24 = vld [vmem:[%s0 + $0x10] sm:$0xf]
  %v25 = vld [vmem:[%s0 + $0x14] sm:$0xf]
  %v26 = vld [vmem:[%s0 + $0x18] sm:$0xf]
  %v27 = vld [vmem:[%s0 + $0x1c] sm:$0xf]
  %v28 = vld [vmem:[%s0 + $0x20] sm:$0xf]
  %v29 = vld [vmem:[%s0 + $0x24] sm:$0xf]
  %v30 = vld [vmem:[%s0 + $0x28] sm:$0xf]
  %v31 = vld [vmem:[%s0 + $0x2c] sm:$0xf]
  %v32 = vld [vmem:[%s0 + $0x30] sm:$0xf]
  %v33 = vld [vmem:[%s0 + $0x34] sm:$0xf]
  %v34 = vld [vmem:[%s0 + $0x38] sm:$0xf]
  %v35 = vld [vmem:[%s0 + $0x3c] sm:$0xf]
  %v36 = vld [vmem:[%s1] sm:$0xf]
  %v37 = vld [vmem:[%s1 + $0x4] sm:$0xf]
  %v38 = vld [vmem:[%s1 + $0x8] sm:$0xf]
  %v39 = vld [vmem:[%s1 + $0xc] sm:$0xf]
  %v40 = vld [vmem:[%s1 + $0x10] sm:$0xf]
  %v41 = vld [vmem:[%s1 + $0x14] sm:$0xf]
  %v42 = vld [vmem:[%s1 + $0x18] sm:$0xf]
  %v43 = vld [vmem:[%s1 + $0x1c] sm:$0xf]
  %v44 = vld [vmem:[%s1 + $0x20] sm:$0xf]
  %v45 = vld [vmem:[%s1 + $0x24] sm:$0xf]
  %v46 = vld [vmem:[%s1 + $0x28] sm:$0xf]
  %v47 = vld [vmem:[%s1 + $0x2c] sm:$0xf]
  %v48 = vld [vmem:[%s1 + $0x30] sm:$0xf]
  %v49 = vld [vmem:[%s1 + $0x34] sm:$0xf]
  %v50 = vld [vmem:[%s1 + $0x38] sm:$0xf]
  %v51 = vld [vmem:[%s1 + $0x3c] sm:$0xf]
  %v68 = vunpack.c.l.b16 %v20
  %v69 = vunpack.c.l.b16 %v21
  %v70 = vunpack.c.l.b16 %v22
  %v71 = vunpack.c.l.b16 %v23
  %v72 = vunpack.c.l.b16 %v24
  %v73 = vunpack.c.l.b16 %v25
  %v74 = vunpack.c.l.b16 %v26
  %v75 = vunpack.c.l.b16 %v27
  %v76 = vunpack.c.l.b16 %v28
  %v77 = vunpack.c.l.b16 %v29
  %v78 = vunpack.c.l.b16 %v30
  %v79 = vunpack.c.l.b16 %v31
  %v80 = vunpack.c.l.b16 %v32
  %v81 = vunpack.c.l.b16 %v33
  %v82 = vunpack.c.l.b16 %v34
  %v83 = vunpack.c.l.b16 %v35
  %v84 = vpack.c.b16 %v69, %v68
  %v85 = vpack.c.b16 %v71, %v70
  %v86 = vpack.c.b16 %v73, %v72
  %v87 = vpack.c.b16 %v75, %v74
  %v88 = vpack.c.b16 %v77, %v76
  %v89 = vpack.c.b16 %v79, %v78
  %v90 = vpack.c.b16 %v81, %v80
  %v91 = vpack.c.b16 %v83, %v82
  %v116 = vunpack.c.l.b16 %v36
  %v117 = vunpack.c.l.b16 %v37
  %v118 = vunpack.c.l.b16 %v38
  %v119 = vunpack.c.l.b16 %v39
  %v120 = vunpack.c.l.b16 %v40
  %v121 = vunpack.c.l.b16 %v41
  %v122 = vunpack.c.l.b16 %v42
  %v123 = vunpack.c.l.b16 %v43
  %v124 = vunpack.c.l.b16 %v44
  %v125 = vunpack.c.l.b16 %v45
  %v126 = vunpack.c.l.b16 %v46
  %v127 = vunpack.c.l.b16 %v47
  %v128 = vunpack.c.l.b16 %v48
  %v129 = vunpack.c.l.b16 %v49
  %v130 = vunpack.c.l.b16 %v50
  %v131 = vunpack.c.l.b16 %v51
  %v132 = vpack.c.b16 %v117, %v116
  %v133 = vpack.c.b16 %v119, %v118
  %v134 = vpack.c.b16 %v121, %v120
  %v135 = vpack.c.b16 %v123, %v122
  %v136 = vpack.c.b16 %v125, %v124
  %v137 = vpack.c.b16 %v127, %v126
  %v138 = vpack.c.b16 %v129, %v128
  %v139 = vpack.c.b16 %v131, %v130
  %148 = vmatprep.subr.bf16.mxu0 0
  %149 = vmatpush1.bf16.msra.mxu0 %v139
  %150 = vmatprep.subr.bf16.mxu0 0
  %151 = vmatpush1.bf16.msra.mxu0 %v138
  %152 = vmatprep.subr.bf16.mxu0 0
  %153 = vmatpush1.bf16.msra.mxu0 %v137
  %154 = vmatprep.subr.bf16.mxu0 0
  %155 = vmatpush1.bf16.msra.mxu0 %v136
  %156 = vmatprep.subr.bf16.mxu0 0
  %157 = vmatpush1.bf16.msra.mxu0 %v135
  %158 = vmatprep.subr.bf16.mxu0 0
  %159 = vmatpush1.bf16.msra.mxu0 %v134
  %160 = vmatprep.subr.bf16.mxu0 0
  %161 = vmatpush1.bf16.msra.mxu0 %v133
  %162 = vmatprep.subr.bf16.mxu0 0
  %163 = vmatpush1.bf16.msra.mxu0 %v132
  %164 = vmatprep.subr.bf16.mxu0 0
  %165 = vmatpush2.bf16.msra.mxu0 0
  %166 = vmatprep.subr.bf16.mxu0 0
  %167 = vmatpush2.bf16.msra.mxu0 0
  %168 = vmatprep.subr.bf16.mxu0 0
  %169 = vmatpush2.bf16.msra.mxu0 0
  %170 = vmatprep.subr.bf16.mxu0 0
  %171 = vmatpush2.bf16.msra.mxu0 0
  %172 = vmatprep.subr.bf16.mxu0 0
  %173 = vmatpush2.bf16.msra.mxu0 0
  %174 = vmatprep.subr.bf16.mxu0 0
  %175 = vmatpush2.bf16.msra.mxu0 0
  %176 = vmatprep.subr.bf16.mxu0 0
  %177 = vmatpush2.bf16.msra.mxu0 0
  %178 = vmatprep.subr.bf16.mxu0 0
  %179 = vmatpush2.bf16.msra.mxu0 0
  %180 = vmatprep.mubr.bf16.mxu0 0
  %181 = vmatmul.mubr.bf16.gmra.mxu0 %v84
  %v182 = vpop.f32.mrf.mxu0
  %v183 = vadd.f32 0.0, %v182
  %v184 = vpop.f32.mrf.mxu0
  %v185 = vpop.f32.mrf.mxu0
  %v186 = vadd.f32 0.0, %v185
  %v187 = vpop.f32.mrf.mxu0
  %188 = vmatprep.mubr.bf16.mxu0 0
  %189 = vmatmul.mubr.bf16.gmra.mxu0 %v85
  %v190 = vpop.f32.mrf.mxu0
  %v191 = vadd.f32 0.0, %v190
  %v192 = vpop.f32.mrf.mxu0
  %v193 = vpop.f32.mrf.mxu0
  %v194 = vadd.f32 0.0, %v193
  %v195 = vpop.f32.mrf.mxu0
  %196 = vmatprep.mubr.bf16.mxu0 0
  %197 = vmatmul.mubr.bf16.gmra.mxu0 %v86
  %v198 = vpop.f32.mrf.mxu0
  %v199 = vadd.f32 0.0, %v198
  %v200 = vpop.f32.mrf.mxu0
  %v201 = vpop.f32.mrf.mxu0
  %v202 = vadd.f32 0.0, %v201
  %v203 = vpop.f32.mrf.mxu0
  %204 = vmatprep.mubr.bf16.mxu0 0
  %205 = vmatmul.mubr.bf16.gmra.mxu0 %v87
  %v206 = vpop.f32.mrf.mxu0
  %v207 = vadd.f32 0.0, %v206
  %v208 = vpop.f32.mrf.mxu0
  %v209 = vpop.f32.mrf.mxu0
  %v210 = vadd.f32 0.0, %v209
  %v211 = vpop.f32.mrf.mxu0
  %212 = vmatprep.mubr.bf16.mxu0 0
  %213 = vmatmul.mubr.bf16.gmra.mxu0 %v88
  %v214 = vpop.f32.mrf.mxu0
  %v215 = vadd.f32 0.0, %v214
  %v216 = vpop.f32.mrf.mxu0
  %v217 = vpop.f32.mrf.mxu0
  %v218 = vadd.f32 0.0, %v217
  %v219 = vpop.f32.mrf.mxu0
  %220 = vmatprep.mubr.bf16.mxu0 0
  %221 = vmatmul.mubr.bf16.gmra.mxu0 %v89
  %v222 = vpop.f32.mrf.mxu0
  %v223 = vadd.f32 0.0, %v222
  %v224 = vpop.f32.mrf.mxu0
  %v225 = vpop.f32.mrf.mxu0
  %v226 = vadd.f32 0.0, %v225
  %v227 = vpop.f32.mrf.mxu0
  %228 = vmatprep.mubr.bf16.mxu0 0
  %229 = vmatmul.mubr.bf16.gmra.mxu0 %v90
  %v230 = vpop.f32.mrf.mxu0
  %v231 = vadd.f32 0.0, %v230
  %v232 = vpop.f32.mrf.mxu0
  %v233 = vpop.f32.mrf.mxu0
  %v234 = vadd.f32 0.0, %v233
  %v235 = vpop.f32.mrf.mxu0
  %236 = vmatprep.mubr.bf16.mxu0 0
  %237 = vmatmul.mubr.bf16.gmra.mxu0 %v91
  %v238 = vpop.f32.mrf.mxu0
  %v239 = vadd.f32 0.0, %v238
  %v240 = vpop.f32.mrf.mxu0
  %v241 = vpop.f32.mrf.mxu0
  %v242 = vadd.f32 0.0, %v241
  %v243 = vpop.f32.mrf.mxu0
  %244 = vdwg.mxu0
  %v245 = vpack.c.bf16 %v186, %v183
  %v246 = vpack.c.bf16 %v194, %v191
  %v247 = vpack.c.bf16 %v202, %v199
  %v248 = vpack.c.bf16 %v210, %v207
  %v249 = vpack.c.bf16 %v218, %v215
  %v250 = vpack.c.bf16 %v226, %v223
  %v251 = vpack.c.bf16 %v234, %v231
  %v252 = vpack.c.bf16 %v242, %v239
  %v261 = vunpack.c.l.b16 %v245
  %v262 = vunpack.c.h.b16 %v245
  %v263 = vunpack.c.l.b16 %v246
  %v264 = vunpack.c.h.b16 %v246
  %v265 = vunpack.c.l.b16 %v247
  %v266 = vunpack.c.h.b16 %v247
  %v267 = vunpack.c.l.b16 %v248
  %v268 = vunpack.c.h.b16 %v248
  %v269 = vunpack.c.l.b16 %v249
  %v270 = vunpack.c.h.b16 %v249
  %v271 = vunpack.c.l.b16 %v250
  %v272 = vunpack.c.h.b16 %v250
  %v273 = vunpack.c.l.b16 %v251
  %v274 = vunpack.c.h.b16 %v251
  %v275 = vunpack.c.l.b16 %v252
  %v276 = vunpack.c.h.b16 %v252
  %v277 = vpack.c.b16 %v261, %v261
  %v278 = vpack.c.b16 %v262, %v262
  %v279 = vpack.c.b16 %v263, %v263
  %v280 = vpack.c.b16 %v264, %v264
  %v281 = vpack.c.b16 %v265, %v265
  %v282 = vpack.c.b16 %v266, %v266
  %v283 = vpack.c.b16 %v267, %v267
  %v284 = vpack.c.b16 %v268, %v268
  %v285 = vpack.c.b16 %v269, %v269
  %v286 = vpack.c.b16 %v270, %v270
  %v287 = vpack.c.b16 %v271, %v271
  %v288 = vpack.c.b16 %v272, %v272
  %v289 = vpack.c.b16 %v273, %v273
  %v290 = vpack.c.b16 %v274, %v274
  %v291 = vpack.c.b16 %v275, %v275
  %v292 = vpack.c.b16 %v276, %v276
  %309 = vst [vmem:[%s4] sm:$0xf] %v277
  %310 = vst [vmem:[%s4 + $0x4] sm:$0xf] %v278
  %311 = vst [vmem:[%s4 + $0x8] sm:$0xf] %v279
  %312 = vst [vmem:[%s4 + $0xc] sm:$0xf] %v280
  %313 = vst [vmem:[%s4 + $0x10] sm:$0xf] %v281
  %314 = vst [vmem:[%s4 + $0x14] sm:$0xf] %v282
  %315 = vst [vmem:[%s4 + $0x18] sm:$0xf] %v283
  %316 = vst [vmem:[%s4 + $0x1c] sm:$0xf] %v284
  %317 = vst [vmem:[%s4 + $0x20] sm:$0xf] %v285
  %318 = vst [vmem:[%s4 + $0x24] sm:$0xf] %v286
  %319 = vst [vmem:[%s4 + $0x28] sm:$0xf] %v287
  %320 = vst [vmem:[%s4 + $0x2c] sm:$0xf] %v288
  %321 = vst [vmem:[%s4 + $0x30] sm:$0xf] %v289
  %322 = vst [vmem:[%s4 + $0x34] sm:$0xf] %v290
  %323 = vst [vmem:[%s4 + $0x38] sm:$0xf] %v291
  %324 = vst [vmem:[%s4 + $0x3c] sm:$0xf] %v292
  %v325 = vld [vmem:[%s2] sm:$0xf]
  %v326 = vld [vmem:[%s2 + $0x4] sm:$0xf]
  %v327 = vld [vmem:[%s2 + $0x8] sm:$0xf]
  %v328 = vld [vmem:[%s2 + $0xc] sm:$0xf]
  %v329 = vld [vmem:[%s2 + $0x10] sm:$0xf]
  %v330 = vld [vmem:[%s2 + $0x14] sm:$0xf]
  %v331 = vld [vmem:[%s2 + $0x18] sm:$0xf]
  %v332 = vld [vmem:[%s2 + $0x1c] sm:$0xf]
  %v333 = vld [vmem:[%s2 + $0x20] sm:$0xf]
  %v334 = vld [vmem:[%s2 + $0x24] sm:$0xf]
  %v335 = vld [vmem:[%s2 + $0x28] sm:$0xf]
  %v336 = vld [vmem:[%s2 + $0x2c] sm:$0xf]
  %v337 = vld [vmem:[%s2 + $0x30] sm:$0xf]
  %v338 = vld [vmem:[%s2 + $0x34] sm:$0xf]
  %v339 = vld [vmem:[%s2 + $0x38] sm:$0xf]
  %v340 = vld [vmem:[%s2 + $0x3c] sm:$0xf]
  %v341 = vld [vmem:[%s3] sm:$0x1]
  %v343 = vlaneseq
  %v344 = vshrl.u32 %v343, 7
  %v345 = vsub.s32 0, %v344
  %v346 = vrot.slane %v341, %v345
  %v364 = vunpack.c.l.b16 %v325
  %v365 = vunpack.c.l.b16 %v326
  %v366 = vunpack.c.l.b16 %v327
  %v367 = vunpack.c.l.b16 %v328
  %v368 = vunpack.c.l.b16 %v329
  %v369 = vunpack.c.l.b16 %v330
  %v370 = vunpack.c.l.b16 %v331
  %v371 = vunpack.c.l.b16 %v332
  %v372 = vunpack.c.l.b16 %v333
  %v373 = vunpack.c.l.b16 %v334
  %v374 = vunpack.c.l.b16 %v335
  %v375 = vunpack.c.l.b16 %v336
  %v376 = vunpack.c.l.b16 %v337
  %v377 = vunpack.c.l.b16 %v338
  %v378 = vunpack.c.l.b16 %v339
  %v379 = vunpack.c.l.b16 %v340
  %v380 = vpack.c.b16 %v365, %v364
  %v381 = vpack.c.b16 %v367, %v366
  %v382 = vpack.c.b16 %v369, %v368
  %v383 = vpack.c.b16 %v371, %v370
  %v384 = vpack.c.b16 %v373, %v372
  %v385 = vpack.c.b16 %v375, %v374
  %v386 = vpack.c.b16 %v377, %v376
  %v387 = vpack.c.b16 %v379, %v378
  %396 = vmatprep.subr.bf16.mxu0 0
  %397 = vmatpush1.bf16.msra.mxu0 %v387
  %398 = vmatprep.subr.bf16.mxu0 0
  %399 = vmatpush1.bf16.msra.mxu0 %v386
  %400 = vmatprep.subr.bf16.mxu0 0
  %401 = vmatpush1.bf16.msra.mxu0 %v385
  %402 = vmatprep.subr.bf16.mxu0 0
  %403 = vmatpush1.bf16.msra.mxu0 %v384
  %404 = vmatprep.subr.bf16.mxu0 0
  %405 = vmatpush1.bf16.msra.mxu0 %v383
  %406 = vmatprep.subr.bf16.mxu0 0
  %407 = vmatpush1.bf16.msra.mxu0 %v382
  %408 = vmatprep.subr.bf16.mxu0 0
  %409 = vmatpush1.bf16.msra.mxu0 %v381
  %410 = vmatprep.subr.bf16.mxu0 0
  %411 = vmatpush1.bf16.msra.mxu0 %v380
  %412 = vmatprep.subr.bf16.mxu0 0
  %413 = vmatpush2.bf16.msra.mxu0 0
  %414 = vmatprep.subr.bf16.mxu0 0
  %415 = vmatpush2.bf16.msra.mxu0 0
  %416 = vmatprep.subr.bf16.mxu0 0
  %417 = vmatpush2.bf16.msra.mxu0 0
  %418 = vmatprep.subr.bf16.mxu0 0
  %419 = vmatpush2.bf16.msra.mxu0 0
  %420 = vmatprep.subr.bf16.mxu0 0
  %421 = vmatpush2.bf16.msra.mxu0 0
  %422 = vmatprep.subr.bf16.mxu0 0
  %423 = vmatpush2.bf16.msra.mxu0 0
  %424 = vmatprep.subr.bf16.mxu0 0
  %425 = vmatpush2.bf16.msra.mxu0 0
  %426 = vmatprep.subr.bf16.mxu0 0
  %427 = vmatpush2.bf16.msra.mxu0 0
  %428 = vmatprep.mubr.bf16.mxu0 0
  %429 = vmatmul.mubr.bf16.gmra.mxu0 %v84
  %v430 = vpop.f32.mrf.mxu0
  %v431 = vadd.f32 %v346, %v430
  %v432 = vpop.f32.mrf.mxu0
  %v433 = vpop.f32.mrf.mxu0
  %v434 = vadd.f32 %v346, %v433
  %v435 = vpop.f32.mrf.mxu0
  %436 = vmatprep.mubr.bf16.mxu0 0
  %437 = vmatmul.mubr.bf16.gmra.mxu0 %v85
  %v438 = vpop.f32.mrf.mxu0
  %v439 = vadd.f32 %v346, %v438
  %v440 = vpop.f32.mrf.mxu0
  %v441 = vpop.f32.mrf.mxu0
  %v442 = vadd.f32 %v346, %v441
  %v443 = vpop.f32.mrf.mxu0
  %444 = vmatprep.mubr.bf16.mxu0 0
  %445 = vmatmul.mubr.bf16.gmra.mxu0 %v86
  %v446 = vpop.f32.mrf.mxu0
  %v447 = vadd.f32 %v346, %v446
  %v448 = vpop.f32.mrf.mxu0
  %v449 = vpop.f32.mrf.mxu0
  %v450 = vadd.f32 %v346, %v449
  %v451 = vpop.f32.mrf.mxu0
  %452 = vmatprep.mubr.bf16.mxu0 0
  %453 = vmatmul.mubr.bf16.gmra.mxu0 %v87
  %v454 = vpop.f32.mrf.mxu0
  %v455 = vadd.f32 %v346, %v454
  %v456 = vpop.f32.mrf.mxu0
  %v457 = vpop.f32.mrf.mxu0
  %v458 = vadd.f32 %v346, %v457
  %v459 = vpop.f32.mrf.mxu0
  %460 = vmatprep.mubr.bf16.mxu0 0
  %461 = vmatmul.mubr.bf16.gmra.mxu0 %v88
  %v462 = vpop.f32.mrf.mxu0
  %v463 = vadd.f32 %v346, %v462
  %v464 = vpop.f32.mrf.mxu0
  %v465 = vpop.f32.mrf.mxu0
  %v466 = vadd.f32 %v346, %v465
  %v467 = vpop.f32.mrf.mxu0
  %468 = vmatprep.mubr.bf16.mxu0 0
  %469 = vmatmul.mubr.bf16.gmra.mxu0 %v89
  %v470 = vpop.f32.mrf.mxu0
  %v471 = vadd.f32 %v346, %v470
  %v472 = vpop.f32.mrf.mxu0
  %v473 = vpop.f32.mrf.mxu0
  %v474 = vadd.f32 %v346, %v473
  %v475 = vpop.f32.mrf.mxu0
  %476 = vmatprep.mubr.bf16.mxu0 0
  %477 = vmatmul.mubr.bf16.gmra.mxu0 %v90
  %v478 = vpop.f32.mrf.mxu0
  %v479 = vadd.f32 %v346, %v478
  %v480 = vpop.f32.mrf.mxu0
  %v481 = vpop.f32.mrf.mxu0
  %v482 = vadd.f32 %v346, %v481
  %v483 = vpop.f32.mrf.mxu0
  %484 = vmatprep.mubr.bf16.mxu0 0
  %485 = vmatmul.mubr.bf16.gmra.mxu0 %v91
  %v486 = vpop.f32.mrf.mxu0
  %v487 = vadd.f32 %v346, %v486
  %v488 = vpop.f32.mrf.mxu0
  %v489 = vpop.f32.mrf.mxu0
  %v490 = vadd.f32 %v346, %v489
  %v491 = vpop.f32.mrf.mxu0
  %492 = vdwg.mxu0
  %493 = vst [vmem:[%s5] sm:$0xff] %v431
  %494 = vst [vmem:[%s5 + $0x8] sm:$0xff] %v434
  %495 = vst [vmem:[%s5 + $0x10] sm:$0xff] %v439
  %496 = vst [vmem:[%s5 + $0x18] sm:$0xff] %v442
  %497 = vst [vmem:[%s5 + $0x20] sm:$0xff] %v447
  %498 = vst [vmem:[%s5 + $0x28] sm:$0xff] %v450
  %499 = vst [vmem:[%s5 + $0x30] sm:$0xff] %v455
  %500 = vst [vmem:[%s5 + $0x38] sm:$0xff] %v458
  %501 = vst [vmem:[%s5 + $0x40] sm:$0xff] %v463
  %502 = vst [vmem:[%s5 + $0x48] sm:$0xff] %v466
  %503 = vst [vmem:[%s5 + $0x50] sm:$0xff] %v471
  %504 = vst [vmem:[%s5 + $0x58] sm:$0xff] %v474
  %505 = vst [vmem:[%s5 + $0x60] sm:$0xff] %v479
  %506 = vst [vmem:[%s5 + $0x68] sm:$0xff] %v482
  %507 = vst [vmem:[%s5 + $0x70] sm:$0xff] %v487
  %508 = vst [vmem:[%s5 + $0x78] sm:$0xff] %v490
  // Predicated region
  $region18: #{sage_forward.4} parent=0 // pred_check
    _
  $region19: #{sage_forward.4} parent=0 // pred_check_branch
    %510 = sbr.rel (0) target = $region21
  $region20: #{sage_forward.4} parent=0 // pred_region
    _
  $region21: #{sage_forward.4} parent=0 // pred_fallthru
    _
  // Predicated region
  $region22: #{sage_forward.4} parent=0 // pred_check
    _
  $region23: #{sage_forward.4} parent=0 // pred_check_branch
    %512 = sbr.rel (0) target = $region25
  $region24: #{sage_forward.4} parent=0 // pred_region
    _
  $region25: #{sage_forward.4} parent=0 // pred_fallthru
    _
  // Predicated region
  $region26: #{sage_forward.4} parent=0 // pred_check
    _
  $region27: #{sage_forward.4} parent=0 // pred_check_branch
    %514 = sbr.rel (0) target = $region29
  $region28: #{sage_forward.4} parent=0 // pred_region
    _
  $region29: #{sage_forward.4} parent=0 // pred_fallthru
    _
  // Predicated region
  $region30: #{sage_forward.4} parent=0 // pred_check
    _
  $region31: #{sage_forward.4} parent=0 // pred_check_branch
    %516 = sbr.rel (0) target = $region33
  $region32: #{sage_forward.4} parent=0 // pred_region
    _
  $region33: #{sage_forward.4} parent=0 // pred_fallthru
    _

</llo_original>
